<compile_context>
chip_gen: v7x
topology: tpu7x:2x2x1
jax: 0.10.0
libtpu: 0.0.40
codegen_flags: <defaults>
</compile_context>

<pallas_src>
import jax
import jax.numpy as jnp
from jax.experimental import pallas as pl
from jax.experimental.pallas import tpu as pltpu

EMB_DIM = 8                          # emb_dim of the module
HALF_EMB = EMB_DIM // 2              # half_emb_dim = 4
ROWS_PER_LANE = 128 // EMB_DIM       # 16 logical rows packed per 128-lane row
X_LANES = ROWS_PER_LANE * EMB_DIM    # 128 lanes for x / recon
H_LANES = ROWS_PER_LANE * HALF_EMB   # 64 lanes for h1 / mu / logvar / z / h3 / eps


def _vae_kernel(x_ref, eps_ref,
                w1_ref, b1_ref,
                w21_ref, b21_ref,
                w22_ref, b22_ref,
                w3_ref, b3_ref,
                w4_ref, b4_ref,
                recon_ref, mu_ref, logvar_ref):
    x = x_ref[...]                                                    # [T, 128]

    # encode: h1 = relu(x @ kron(I16, W1^T))                          # [T, 64]
    h1 = jnp.dot(x, w1_ref[...], preferred_element_type=jnp.float32) + b1_ref[...]
    h1 = jnp.maximum(h1, 0.0)

    # fc21 / fc22 directly in the packed [*, 64] layout
    mu = jnp.dot(h1, w21_ref[...], preferred_element_type=jnp.float32) + b21_ref[...]
    logvar = jnp.dot(h1, w22_ref[...], preferred_element_type=jnp.float32) + b22_ref[...]

    # reparameterize: z = mu + eps * exp(0.5 * logvar)
    # TODO(synk): optionally generate eps in-kernel (pltpu.prng_seed +
    # pltpu.stateful_normal) to drop the eps HBM stream (~14% of traffic);
    # kept external for deterministic, testable noise.
    z = mu + eps_ref[...] * jnp.exp(0.5 * logvar)                     # [T, 64]

    # decode: sigmoid(relu(z @ W3) @ W4)
    h3 = jnp.dot(z, w3_ref[...], preferred_element_type=jnp.float32) + b3_ref[...]
    h3 = jnp.maximum(h3, 0.0)                                         # [T, 64]
    logits = jnp.dot(h3, w4_ref[...], preferred_element_type=jnp.float32) + b4_ref[...]
    recon_ref[...] = 1.0 / (1.0 + jnp.exp(-logits))                   # exact sigmoid, [T, 128]

    mu_ref[...] = mu
    logvar_ref[...] = logvar


def init_params(key, emb_dim=EMB_DIM):
    """Deterministic synthetic parameters, PyTorch nn.Linear shapes: W [out,in], b [1,out]."""
    half = emb_dim // 2
    shapes = [
        ("w1", (4, 8)), ("b1", (1, 4)),
        ("w21", (half, 4)), ("b21", (1, half)),
        ("w22", (half, 4)), ("b22", (1, half)),
        ("w3", (4, half)), ("b3", (1, 4)),
        ("w4", (8, 4)), ("b4", (1, 8)),
    ]
    keys = jax.random.split(key, len(shapes))
    params = {}
    for k, (name, shp) in zip(keys, shapes):
        params[name] = (0.1 * jax.random.normal(k, shp)).astype(jnp.float32)
    return params


def pack_params(params):
    """Build block-diagonal (kron) weights so each layer is a lane-dense matmul.

    kron(I_16, W^T) maps the packed layout [.., 16*in] -> [.., 16*out]; biases are
    tiled 16x.  All packed weights together are < 200 KiB and stay VMEM-resident.
    """
    eye = jnp.eye(ROWS_PER_LANE, dtype=jnp.float32)

    def blockdiag(w):            # w: [out, in] torch convention -> [16*in, 16*out]
        return jnp.kron(eye, w.T.astype(jnp.float32))

    def tiled_bias(b):           # b: [1, out] -> [1, 16*out]
        return jnp.tile(b.reshape(1, -1).astype(jnp.float32), (1, ROWS_PER_LANE))

    w1k = blockdiag(params["w1"])      # [128, 64]
    b1k = tiled_bias(params["b1"])     # [1, 64]
    w21k = blockdiag(params["w21"])    # [64, 64]
    b21k = tiled_bias(params["b21"])   # [1, 64]
    w22k = blockdiag(params["w22"])    # [64, 64]
    b22k = tiled_bias(params["b22"])   # [1, 64]
    w3k = blockdiag(params["w3"])      # [64, 64]
    b3k = tiled_bias(params["b3"])     # [1, 64]
    w4k = blockdiag(params["w4"])      # [64, 128]
    b4k = tiled_bias(params["b4"])     # [1, 128]
    return w1k, b1k, w21k, b21k, w22k, b22k, w3k, b3k, w4k, b4k


def vae_forward(x, eps, params, *, tile_n=65536):
    """x: any shape flattening to [-1, 8]; eps: [N, half_emb] standard-normal noise.

    Returns (recon [N,8], mu [N,4], logvar [N,4])."""
    x2 = x.reshape(-1, EMB_DIM).astype(jnp.float32)                   # mirrors x.view(-1, 8)
    n = x2.shape[0]
    eps2 = eps.reshape(n, HALF_EMB).astype(jnp.float32)

    # Pad logical rows to a multiple of 16 so the lane-packing reshape is free.
    n_pad = ((n + ROWS_PER_LANE - 1) // ROWS_PER_LANE) * ROWS_PER_LANE
    if n_pad != n:
        pad = n_pad - n
        x2 = jnp.pad(x2, ((0, pad), (0, 0)))
        eps2 = jnp.pad(eps2, ((0, pad), (0, 0)))

    # Lane-dense packed views (contiguous reshapes -> no data movement).
    xp = x2.reshape(n_pad // ROWS_PER_LANE, X_LANES)                  # [P, 128]
    ep = eps2.reshape(n_pad // ROWS_PER_LANE, H_LANES)                # [P, 64]
    num_packed = xp.shape[0]

    # Batch tile in packed rows.  Default 4096 packed rows = 65536 logical rows
    # (~14 MiB of double-buffered streams in the packed layout), sublane-legal.
    tile_p = max(1, min(tile_n // ROWS_PER_LANE, num_packed))
    if tile_p < num_packed and tile_p % 8 != 0:
        tile_p = max(8, (tile_p // 8) * 8)
    grid = (pl.cdiv(num_packed, tile_p),)

    packed_w = pack_params(params)
    w1k, b1k, w21k, b21k, w22k, b22k, w3k, b3k, w4k, b4k = packed_w

    def row_spec(width):
        # streamed over the (packed) batch axis
        return pl.BlockSpec((tile_p, width), lambda i: (i, 0))

    def const_spec(arr):
        # whole (tiny) array, constant index -> resident in VMEM across steps
        return pl.BlockSpec(arr.shape, lambda i: (0, 0))

    # Real traffic: streams + one pass over the (tiny) weights.
    stream_bytes = 4 * (xp.size + ep.size
                        + num_packed * (X_LANES + H_LANES + H_LANES))
    weight_bytes = 4 * sum(int(w.size) for w in packed_w)
    cost = pl.CostEstimate(
        flops=2 * num_packed * (X_LANES * H_LANES            # fc1
                                + H_LANES * H_LANES * 3      # fc21, fc22, fc3
                                + H_LANES * X_LANES),        # fc4
        transcendentals=12 * n_pad,                          # exp(0.5*logvar) + sigmoid
        bytes_accessed=stream_bytes + weight_bytes,
    )

    # 48 MiB scoped VMEM: plenty for the packed double-buffered streams at the
    # default tile (~14 MiB) + ~0.2 MiB weights; above v5e's 16 MiB default
    # scoped limit, below v7x's 64 MiB per-TC physical VMEM.
    compiler_params = pltpu.CompilerParams(
        dimension_semantics=("parallel",),        # split batch grid across v7x's 2 TCs
        vmem_limit_bytes=48 * 1024 * 1024,
    )

    recon_p, mu_p, logvar_p = pl.pallas_call(
        _vae_kernel,
        grid=grid,
        out_shape=(
            jax.ShapeDtypeStruct((num_packed, X_LANES), jnp.float32),   # recon
            jax.ShapeDtypeStruct((num_packed, H_LANES), jnp.float32),   # mu
            jax.ShapeDtypeStruct((num_packed, H_LANES), jnp.float32),   # logvar
        ),
        in_specs=[
            row_spec(X_LANES),                    # x  [P, 128]
            row_spec(H_LANES),                    # eps [P, 64]
            const_spec(w1k), const_spec(b1k),
            const_spec(w21k), const_spec(b21k),
            const_spec(w22k), const_spec(b22k),
            const_spec(w3k), const_spec(b3k),
            const_spec(w4k), const_spec(b4k),
        ],
        out_specs=(
            pl.BlockSpec((tile_p, X_LANES), lambda i: (i, 0)),
            pl.BlockSpec((tile_p, H_LANES), lambda i: (i, 0)),
            pl.BlockSpec((tile_p, H_LANES), lambda i: (i, 0)),
        ),
        compiler_params=compiler_params,
        cost_estimate=cost,
    )(xp, ep, w1k, b1k, w21k, b21k, w22k, b22k, w3k, b3k, w4k, b4k)

    # Free contiguous reshapes back to logical layout; slice only if we padded.
    recon = recon_p.reshape(n_pad, EMB_DIM)
    mu = mu_p.reshape(n_pad, HALF_EMB)
    logvar = logvar_p.reshape(n_pad, HALF_EMB)
    if n_pad != n:
        recon, mu, logvar = recon[:n], mu[:n], logvar[:n]
    return recon, mu, logvar


def vae_reference(x, eps, params):
    """Pure-JAX reference mirroring the PyTorch module."""
    x2 = x.reshape(-1, EMB_DIM).astype(jnp.float32)
    h1 = jnp.maximum(x2 @ params["w1"].T + params["b1"], 0.0)
    mu = h1 @ params["w21"].T + params["b21"]
    logvar = h1 @ params["w22"].T + params["b22"]
    z = mu + eps * jnp.exp(0.5 * logvar)
    h3 = jnp.maximum(z @ params["w3"].T + params["b3"], 0.0)
    recon = jax.nn.sigmoid(h3 @ params["w4"].T + params["b4"])
    return recon, mu, logvar


if __name__ == "__main__":
    key = jax.random.PRNGKey(0)
    k_param, k_x, k_eps = jax.random.split(key, 3)

    params = init_params(k_param)

    # Small input consistent with the module: (2, 4, 16, 16) flattens to 256 rows of 8.
    x = jax.random.normal(k_x, (2, 4, 16, 16), dtype=jnp.float32)
    n_rows = x.size // EMB_DIM
    # eps plays the role of torch.randn_like(std) in reparameterize (passed
    # explicitly for determinism).
    eps = jax.random.normal(k_eps, (n_rows, HALF_EMB), dtype=jnp.float32)

    # Small tile so the demo exercises multiple grid steps:
    # 256 rows -> 16 packed rows; tile_n=128 -> 8-packed-row tiles -> 2 steps.
    recon, mu, logvar = vae_forward(x, eps, params, tile_n=128)
    jax.block_until_ready((recon, mu, logvar))

    assert recon.shape == (n_rows, EMB_DIM)
    assert mu.shape == (n_rows, HALF_EMB)
    assert logvar.shape == (n_rows, HALF_EMB)

    r_ref, m_ref, lv_ref = vae_reference(x, eps, params)
    assert jnp.allclose(recon, r_ref, atol=1e-4, rtol=1e-4)
    assert jnp.allclose(mu, m_ref, atol=1e-4, rtol=1e-4)
    assert jnp.allclose(logvar, lv_ref, atol=1e-4, rtol=1e-4)

    print("KERNEL_OK")
</pallas_src>

<mosaic_0001>
module attributes {stable_mosaic.version = 11 : i64} {
  func.func @_vae_kernel(%arg0: i32, %arg1: memref<8x128xf32, #tpu.memory_space<vmem>>, %arg2: memref<8x64xf32, #tpu.memory_space<vmem>>, %arg3: memref<128x64xf32, #tpu.memory_space<vmem>>, %arg4: memref<1x64xf32, #tpu.memory_space<vmem>>, %arg5: memref<64x64xf32, #tpu.memory_space<vmem>>, %arg6: memref<1x64xf32, #tpu.memory_space<vmem>>, %arg7: memref<64x64xf32, #tpu.memory_space<vmem>>, %arg8: memref<1x64xf32, #tpu.memory_space<vmem>>, %arg9: memref<64x64xf32, #tpu.memory_space<vmem>>, %arg10: memref<1x64xf32, #tpu.memory_space<vmem>>, %arg11: memref<64x128xf32, #tpu.memory_space<vmem>>, %arg12: memref<1x128xf32, #tpu.memory_space<vmem>>, %arg13: memref<8x128xf32, #tpu.memory_space<vmem>>, %arg14: memref<8x64xf32, #tpu.memory_space<vmem>>, %arg15: memref<8x64xf32, #tpu.memory_space<vmem>>) attributes {dimension_semantics = [#tpu.dimension_semantics<parallel>], iteration_bounds = array<i64: 2>, scalar_prefetch = 0 : i64, scratch_operands = 0 : i64, tpu.core_type = #tpu.core_type<tc>, window_params = [{transform_indices = @transform_0, window_bounds = array<i64: 8, 128>}, {transform_indices = @transform_1, window_bounds = array<i64: 8, 64>}, {pipeline_mode = #tpu.pipeline_mode<synchronous>, transform_indices = @transform_2, window_bounds = array<i64: 128, 64>}, {pipeline_mode = #tpu.pipeline_mode<synchronous>, transform_indices = @transform_3, window_bounds = array<i64: 1, 64>}, {pipeline_mode = #tpu.pipeline_mode<synchronous>, transform_indices = @transform_4, window_bounds = array<i64: 64, 64>}, {pipeline_mode = #tpu.pipeline_mode<synchronous>, transform_indices = @transform_5, window_bounds = array<i64: 1, 64>}, {pipeline_mode = #tpu.pipeline_mode<synchronous>, transform_indices = @transform_6, window_bounds = array<i64: 64, 64>}, {pipeline_mode = #tpu.pipeline_mode<synchronous>, transform_indices = @transform_7, window_bounds = array<i64: 1, 64>}, {pipeline_mode = #tpu.pipeline_mode<synchronous>, transform_indices = @transform_8, window_bounds = array<i64: 64, 64>}, {pipeline_mode = #tpu.pipeline_mode<synchronous>, transform_indices = @transform_9, window_bounds = array<i64: 1, 64>}, {pipeline_mode = #tpu.pipeline_mode<synchronous>, transform_indices = @transform_10, window_bounds = array<i64: 64, 128>}, {pipeline_mode = #tpu.pipeline_mode<synchronous>, transform_indices = @transform_11, window_bounds = array<i64: 1, 128>}, {transform_indices = @transform_12, window_bounds = array<i64: 8, 128>}, {transform_indices = @transform_13, window_bounds = array<i64: 8, 64>}, {transform_indices = @transform_14, window_bounds = array<i64: 8, 64>}]} {
    %c0 = arith.constant 0 : index
    %c0_0 = arith.constant 0 : index
    %0 = vector.load %arg1[%c0, %c0_0] : memref<8x128xf32, #tpu.memory_space<vmem>>, vector<8x128xf32>
    %c0_1 = arith.constant 0 : index
    %c0_2 = arith.constant 0 : index
    %1 = vector.load %arg3[%c0_1, %c0_2] : memref<128x64xf32, #tpu.memory_space<vmem>>, vector<128x64xf32>
    %cst = arith.constant dense<0.000000e+00> : vector<8x64xf32>
    %2 = tpu.matmul %0, %1, %cst {dimension_numbers = #tpu.dot_dimension_numbers<[1], [0], [0], [1], [0, 0, 1, 1], [], []>} : vector<8x128xf32>, vector<128x64xf32>, vector<8x64xf32> -> vector<8x64xf32>
    %c0_3 = arith.constant 0 : index
    %c0_4 = arith.constant 0 : index
    %3 = vector.load %arg4[%c0_3, %c0_4] : memref<1x64xf32, #tpu.memory_space<vmem>>, vector<1x64xf32>
    %4 = vector.broadcast %3 : vector<1x64xf32> to vector<8x64xf32>
    %5 = arith.addf %2, %4 : vector<8x64xf32>
    %cst_5 = arith.constant 0.000000e+00 : f32
    %6 = vector.broadcast %cst_5 : f32 to vector<8x64xf32>
    %7 = arith.maximumf %5, %6 : vector<8x64xf32>
    %c0_6 = arith.constant 0 : index
    %c0_7 = arith.constant 0 : index
    %8 = vector.load %arg5[%c0_6, %c0_7] : memref<64x64xf32, #tpu.memory_space<vmem>>, vector<64x64xf32>
    %cst_8 = arith.constant dense<0.000000e+00> : vector<8x64xf32>
    %9 = tpu.matmul %7, %8, %cst_8 {dimension_numbers = #tpu.dot_dimension_numbers<[1], [0], [0], [1], [0, 0, 1, 1], [], []>} : vector<8x64xf32>, vector<64x64xf32>, vector<8x64xf32> -> vector<8x64xf32>
    %c0_9 = arith.constant 0 : index
    %c0_10 = arith.constant 0 : index
    %10 = vector.load %arg6[%c0_9, %c0_10] : memref<1x64xf32, #tpu.memory_space<vmem>>, vector<1x64xf32>
    %11 = vector.broadcast %10 : vector<1x64xf32> to vector<8x64xf32>
    %12 = arith.addf %9, %11 : vector<8x64xf32>
    %c0_11 = arith.constant 0 : index
    %c0_12 = arith.constant 0 : index
    %13 = vector.load %arg7[%c0_11, %c0_12] : memref<64x64xf32, #tpu.memory_space<vmem>>, vector<64x64xf32>
    %cst_13 = arith.constant dense<0.000000e+00> : vector<8x64xf32>
    %14 = tpu.matmul %7, %13, %cst_13 {dimension_numbers = #tpu.dot_dimension_numbers<[1], [0], [0], [1], [0, 0, 1, 1], [], []>} : vector<8x64xf32>, vector<64x64xf32>, vector<8x64xf32> -> vector<8x64xf32>
    %c0_14 = arith.constant 0 : index
    %c0_15 = arith.constant 0 : index
    %15 = vector.load %arg8[%c0_14, %c0_15] : memref<1x64xf32, #tpu.memory_space<vmem>>, vector<1x64xf32>
    %16 = vector.broadcast %15 : vector<1x64xf32> to vector<8x64xf32>
    %17 = arith.addf %14, %16 : vector<8x64xf32>
    %c0_16 = arith.constant 0 : index
    %c0_17 = arith.constant 0 : index
    %18 = vector.load %arg2[%c0_16, %c0_17] : memref<8x64xf32, #tpu.memory_space<vmem>>, vector<8x64xf32>
    %cst_18 = arith.constant 5.000000e-01 : f32
    %19 = vector.broadcast %cst_18 : f32 to vector<8x64xf32>
    %20 = arith.mulf %19, %17 : vector<8x64xf32>
    %21 = math.exp %20 : vector<8x64xf32>
    %22 = arith.mulf %18, %21 : vector<8x64xf32>
    %23 = arith.addf %12, %22 : vector<8x64xf32>
    %c0_19 = arith.constant 0 : index
    %c0_20 = arith.constant 0 : index
    %24 = vector.load %arg9[%c0_19, %c0_20] : memref<64x64xf32, #tpu.memory_space<vmem>>, vector<64x64xf32>
    %cst_21 = arith.constant dense<0.000000e+00> : vector<8x64xf32>
    %25 = tpu.matmul %23, %24, %cst_21 {dimension_numbers = #tpu.dot_dimension_numbers<[1], [0], [0], [1], [0, 0, 1, 1], [], []>} : vector<8x64xf32>, vector<64x64xf32>, vector<8x64xf32> -> vector<8x64xf32>
    %c0_22 = arith.constant 0 : index
    %c0_23 = arith.constant 0 : index
    %26 = vector.load %arg10[%c0_22, %c0_23] : memref<1x64xf32, #tpu.memory_space<vmem>>, vector<1x64xf32>
    %27 = vector.broadcast %26 : vector<1x64xf32> to vector<8x64xf32>
    %28 = arith.addf %25, %27 : vector<8x64xf32>
    %cst_24 = arith.constant 0.000000e+00 : f32
    %29 = vector.broadcast %cst_24 : f32 to vector<8x64xf32>
    %30 = arith.maximumf %28, %29 : vector<8x64xf32>
    %c0_25 = arith.constant 0 : index
    %c0_26 = arith.constant 0 : index
    %31 = vector.load %arg11[%c0_25, %c0_26] : memref<64x128xf32, #tpu.memory_space<vmem>>, vector<64x128xf32>
    %cst_27 = arith.constant dense<0.000000e+00> : vector<8x128xf32>
    %32 = tpu.matmul %30, %31, %cst_27 {dimension_numbers = #tpu.dot_dimension_numbers<[1], [0], [0], [1], [0, 0, 1, 1], [], []>} : vector<8x64xf32>, vector<64x128xf32>, vector<8x128xf32> -> vector<8x128xf32>
    %c0_28 = arith.constant 0 : index
    %c0_29 = arith.constant 0 : index
    %33 = vector.load %arg12[%c0_28, %c0_29] : memref<1x128xf32, #tpu.memory_space<vmem>>, vector<1x128xf32>
    %34 = vector.broadcast %33 : vector<1x128xf32> to vector<8x128xf32>
    %35 = arith.addf %32, %34 : vector<8x128xf32>
    %cst_30 = arith.constant 0.000000e+00 : f32
    %36 = vector.broadcast %cst_30 : f32 to vector<8x128xf32>
    %37 = arith.subf %36, %35 : vector<8x128xf32>
    %38 = math.exp %37 : vector<8x128xf32>
    %cst_31 = arith.constant 1.000000e+00 : f32
    %39 = vector.broadcast %cst_31 : f32 to vector<8x128xf32>
    %40 = arith.addf %39, %38 : vector<8x128xf32>
    %cst_32 = arith.constant 1.000000e+00 : f32
    %41 = vector.broadcast %cst_32 : f32 to vector<8x128xf32>
    %42 = arith.divf %41, %40 : vector<8x128xf32>
    %c0_33 = arith.constant 0 : index
    %c0_34 = arith.constant 0 : index
    %43 = vector.load %arg13[%c0_33, %c0_34] : memref<8x128xf32, #tpu.memory_space<vmem>>, vector<8x128xf32>
    tpu.vector_store %arg13[%c0_33, %c0_34], %42 {strides = array<i32>} : memref<8x128xf32, #tpu.memory_space<vmem>>, vector<8x128xf32>,
    %c0_35 = arith.constant 0 : index
    %c0_36 = arith.constant 0 : index
    %44 = vector.load %arg14[%c0_35, %c0_36] : memref<8x64xf32, #tpu.memory_space<vmem>>, vector<8x64xf32>
    tpu.vector_store %arg14[%c0_35, %c0_36], %12 {strides = array<i32>} : memref<8x64xf32, #tpu.memory_space<vmem>>, vector<8x64xf32>,
    %c0_37 = arith.constant 0 : index
    %c0_38 = arith.constant 0 : index
    %45 = vector.load %arg15[%c0_37, %c0_38] : memref<8x64xf32, #tpu.memory_space<vmem>>, vector<8x64xf32>
    tpu.vector_store %arg15[%c0_37, %c0_38], %17 {strides = array<i32>} : memref<8x64xf32, #tpu.memory_space<vmem>>, vector<8x64xf32>,
    return
  }
  func.func @transform_0(%arg0: i32) -> (i32, i32) {
    %c0_i32 = arith.constant 0 : i32
    %c0_i32_0 = arith.constant 0 : i32
    return %arg0, %c0_i32 : i32, i32
  }
  func.func @transform_1(%arg0: i32) -> (i32, i32) {
    %c0_i32 = arith.constant 0 : i32
    %c0_i32_0 = arith.constant 0 : i32
    return %arg0, %c0_i32 : i32, i32
  }
  func.func @transform_2(%arg0: i32) -> (i32, i32) {
    %c0_i32 = arith.constant 0 : i32
    %c0_i32_0 = arith.constant 0 : i32
    %c0_i32_1 = arith.constant 0 : i32
    return %c0_i32, %c0_i32_0 : i32, i32
  }
  func.func @transform_3(%arg0: i32) -> (i32, i32) {
    %c0_i32 = arith.constant 0 : i32
    %c0_i32_0 = arith.constant 0 : i32
    %c0_i32_1 = arith.constant 0 : i32
    return %c0_i32, %c0_i32_0 : i32, i32
  }
  func.func @transform_4(%arg0: i32) -> (i32, i32) {
    %c0_i32 = arith.constant 0 : i32
    %c0_i32_0 = arith.constant 0 : i32
    %c0_i32_1 = arith.constant 0 : i32
    return %c0_i32, %c0_i32_0 : i32, i32
  }
  func.func @transform_5(%arg0: i32) -> (i32, i32) {
    %c0_i32 = arith.constant 0 : i32
    %c0_i32_0 = arith.constant 0 : i32
    %c0_i32_1 = arith.constant 0 : i32
    return %c0_i32, %c0_i32_0 : i32, i32
  }
  func.func @transform_6(%arg0: i32) -> (i32, i32) {
    %c0_i32 = arith.constant 0 : i32
    %c0_i32_0 = arith.constant 0 : i32
    %c0_i32_1 = arith.constant 0 : i32
    return %c0_i32, %c0_i32_0 : i32, i32
  }
  func.func @transform_7(%arg0: i32) -> (i32, i32) {
    %c0_i32 = arith.constant 0 : i32
    %c0_i32_0 = arith.constant 0 : i32
    %c0_i32_1 = arith.constant 0 : i32
    return %c0_i32, %c0_i32_0 : i32, i32
  }
  func.func @transform_8(%arg0: i32) -> (i32, i32) {
    %c0_i32 = arith.constant 0 : i32
    %c0_i32_0 = arith.constant 0 : i32
    %c0_i32_1 = arith.constant 0 : i32
    return %c0_i32, %c0_i32_0 : i32, i32
  }
  func.func @transform_9(%arg0: i32) -> (i32, i32) {
    %c0_i32 = arith.constant 0 : i32
    %c0_i32_0 = arith.constant 0 : i32
    %c0_i32_1 = arith.constant 0 : i32
    return %c0_i32, %c0_i32_0 : i32, i32
  }
  func.func @transform_10(%arg0: i32) -> (i32, i32) {
    %c0_i32 = arith.constant 0 : i32
    %c0_i32_0 = arith.constant 0 : i32
    %c0_i32_1 = arith.constant 0 : i32
    return %c0_i32, %c0_i32_0 : i32, i32
  }
  func.func @transform_11(%arg0: i32) -> (i32, i32) {
    %c0_i32 = arith.constant 0 : i32
    %c0_i32_0 = arith.constant 0 : i32
    %c0_i32_1 = arith.constant 0 : i32
    return %c0_i32, %c0_i32_0 : i32, i32
  }
  func.func @transform_12(%arg0: i32) -> (i32, i32) {
    %c0_i32 = arith.constant 0 : i32
    %c0_i32_0 = arith.constant 0 : i32
    return %arg0, %c0_i32 : i32, i32
  }
  func.func @transform_13(%arg0: i32) -> (i32, i32) {
    %c0_i32 = arith.constant 0 : i32
    %c0_i32_0 = arith.constant 0 : i32
    return %arg0, %c0_i32 : i32, i32
  }
  func.func @transform_14(%arg0: i32) -> (i32, i32) {
    %c0_i32 = arith.constant 0 : i32
    %c0_i32_0 = arith.constant 0 : i32
    return %arg0, %c0_i32 : i32, i32
  }
}

</mosaic_0001>

<llo_original>
// kernel: tpu_custom_call.1
$region0: #{tpu_custom_call.1}
  #allocation0 [shape = 'u32[]', space=smem, size = 0x4, offset = 0x4, fixed_abs, tag = 'smem constant byte address 0x4 - core index']
  #allocation1 [shape = 'u32[144,128]{1,0:T(1,128)}', space=vmem, size = 0x12000, scoped, tag = 'internal scratch']
  %s0 = inlined_call_operand.hbm [shape: f32[16,128], index: 0, kind: input, shape index: {}]
  %s1 = inlined_call_operand.hbm [shape: f32[16,64], index: 1, kind: input, shape index: {}]
  %s2 = inlined_call_operand.vmem [shape: f32[128,64], index: 2, kind: input, shape index: {}]
  %s3 = inlined_call_operand.vmem [shape: f32[1,64], index: 3, kind: input, shape index: {}]
  %s4 = inlined_call_operand.vmem [shape: f32[64,64], index: 4, kind: input, shape index: {}]
  %s5 = inlined_call_operand.vmem [shape: f32[1,64], index: 5, kind: input, shape index: {}]
  %s6 = inlined_call_operand.vmem [shape: f32[64,64], index: 6, kind: input, shape index: {}]
  %s7 = inlined_call_operand.vmem [shape: f32[1,64], index: 7, kind: input, shape index: {}]
  %s8 = inlined_call_operand.vmem [shape: f32[64,64], index: 8, kind: input, shape index: {}]
  %s9 = inlined_call_operand.vmem [shape: f32[1,64], index: 9, kind: input, shape index: {}]
  %s10 = inlined_call_operand.hbm [shape: f32[64,128], index: 10, kind: input, shape index: {}]
  %s11 = inlined_call_operand.vmem [shape: f32[1,128], index: 11, kind: input, shape index: {}]
  %s12 = inlined_call_operand.hbm [shape: f32[16,128], index: 12, kind: output, shape index: {0}]
  %s13 = inlined_call_operand.hbm [shape: f32[16,64], index: 13, kind: output, shape index: {1}]
  %s14 = inlined_call_operand.hbm [shape: f32[16,64], index: 14, kind: output, shape index: {2}]
  %15 = xla_tuple %s12, %s13, %s14
  %s16 = sld [smem:[#allocation0]]
  $region109: #{tpu_custom_call.1} parent=0
    _
  %s18 = ssub.s32 1, %s16
  %s19 = scalar_select 0, %s18, %s16
  $region1: #{tpu_custom_call.1} parent=0
    #allocation2 [shape = 'u8[8192]{0}', space=vmem, size = 0x2000, scoped, tag = 'input window, operand 0']
    #allocation3 [shape = 's32[2]{0}', space=sflag, size = 0x8, scoped, tag = 'scoped memory for tpu_custom_call.1']
    #allocation4 [shape = 's32[2]{0}', space=sflag, size = 0x8, scoped, tag = 'scoped memory for tpu_custom_call.1']
    #allocation5 [shape = 'u8[8192]{0}', space=vmem, size = 0x2000, scoped, tag = 'input window, operand 1']
    #allocation6 [shape = 's32[2]{0}', space=sflag, size = 0x8, scoped, tag = 'scoped memory for tpu_custom_call.1']
    #allocation7 [shape = 'u8[32768]{0}', space=vmem, size = 0x8000, scoped, tag = 'input window, operand 10, single buffered']
    #allocation8 [shape = 'u8[8192]{0}', space=vmem, size = 0x2000, scoped, tag = 'output window, operand 0']
    #allocation9 [shape = 'u8[8192]{0}', space=vmem, size = 0x2000, scoped, tag = 'output window, operand 1']
    #allocation10 [shape = 's32[2]{0}', space=sflag, size = 0x8, scoped, tag = 'scoped memory for tpu_custom_call.1']
    #allocation11 [shape = 'u8[8192]{0}', space=vmem, size = 0x2000, scoped, tag = 'output window, operand 2']
    %20 = vsyncpa [#allocation3], 0
    %s21 = scalar_lea.sflag [#allocation3], 1
    %22 = vsyncpa %s21, 0
    %23 = vsyncpa [#allocation6], 0
    %s24 = scalar_lea.sflag [#allocation6], 1
    %25 = vsyncpa %s24, 0
    %26 = vsyncpa [#allocation4], 0
    %s27 = scalar_lea.sflag [#allocation4], 1
    %28 = vsyncpa %s27, 0
    %29 = vsyncpa [#allocation10], 0
    %s30 = scalar_lea.sflag [#allocation10], 1
    %31 = vsyncpa %s30, 0
    loop: start=0, step=1, limit=4
    $region2: #{tpu_custom_call.1} parent=1 // loop_pre_header
      _
    $region3: #{tpu_custom_call.1} parent=1 // loop_header
      %s33 = sphi 0, %s37
      %p34 = scmp.ge.s32.totalorder %s33, 4
      %s43 = sphi 0, %s45
      %s46 = sphi 0, %s43
      %s47 = sphi 0, %s46
      %s63 = sphi 0, %s47
      %s69 = sphi 0, %s71
      %s72 = sphi 0, %s69
      %s73 = sphi 0, %s72
      %s89 = sphi 0, %s73
      %s93 = sphi 0, %s93
      %s95 = sphi 0, %s93
      %s96 = sphi 0, %s95
      %s110 = sphi 0, %s96
      %s114 = sphi 0, %s114
      %s116 = sphi 0, %s114
      %s117 = sphi 0, %s116
      %s131 = sphi 0, %s117
      %s135 = sphi 0, %s135
      %s137 = sphi 0, %s135
      %s138 = sphi 0, %s137
      %s152 = sphi 0, %s138
      %s156 = sphi 0, %s156
      %s158 = sphi 0, %s156
      %s159 = sphi 0, %s158
      %s173 = sphi 0, %s159
      %s177 = sphi 0, %s177
      %s179 = sphi 0, %s177
      %s180 = sphi 0, %s179
      %s194 = sphi 0, %s180
      %s198 = sphi 0, %s198
      %s200 = sphi 0, %s198
      %s201 = sphi 0, %s200
      %s215 = sphi 0, %s201
      %s219 = sphi 0, %s219
      %s221 = sphi 0, %s219
      %s222 = sphi 0, %s221
      %s236 = sphi 0, %s222
      %s240 = sphi 0, %s240
      %s242 = sphi 0, %s240
      %s243 = sphi 0, %s242
      %s257 = sphi 0, %s243
      %s261 = sphi 0, %s261
      %s263 = sphi 0, %s261
      %s264 = sphi 0, %s263
      %s278 = sphi 0, %s264
      %s282 = sphi 0, %s282
      %s284 = sphi 0, %s282
      %s285 = sphi 0, %s284
      %s299 = sphi 0, %s285
      %s305 = sphi 0, %s307
      %s308 = sphi 0, %s305
      %s309 = sphi 0, %s308
      %s325 = sphi 0, %s309
      %s331 = sphi 0, %s333
      %s334 = sphi 0, %s331
      %s335 = sphi 0, %s334
      %s351 = sphi 0, %s335
      %s357 = sphi 0, %s359
      %s360 = sphi 0, %s357
      %s361 = sphi 0, %s360
      %s377 = sphi 0, %s361
    $region4: #{tpu_custom_call.1} parent=1 // loop_header_branch
      %36 = sbr.rel (%p34) target = $region8
    $region5: #{tpu_custom_call.1} parent=1 // loop_body
      %s38 = ssub.s32 %s33, 1
      %s39 = ssub.s32 %s33, 2
      %s40 = sadd.s32 %s33, 1
      %s41 = ssub.s32 %s33, %s40
      %p42 = scmp.eq.s32.totalorder %s41, 0
      %s44 = sadd.s32 %s43, 1
      %s45 = scalar_select %p42, %s43, %s44
      %p48 = pneg %p42
      %p49 = scmp.eq.s32.totalorder %s33, 1
      %p50 = por %p48, %p49
      %p51 = scmp.ne.s32.totalorder %s43, %s46
      %p52 = scmp.eq.s32.totalorder %s33, 0
      %p53 = por %p51, %p52
      %p54 = scmp.ne.s32.totalorder %s43, %s46
      %p55 = scmp.eq.s32.totalorder %s38, 1
      %p56 = por %p54, %p55
      %p57 = scmp.ne.s32.totalorder %s46, %s47
      %p58 = scmp.eq.s32.totalorder %s38, 0
      %p59 = por %p57, %p58
      %p60 = scmp.ne.s32.totalorder %s46, %s47
      %p61 = scmp.eq.s32.totalorder %s39, 1
      %p62 = por %p60, %p61
      %p64 = scmp.ne.s32.totalorder %s47, %s63
      %p65 = scmp.eq.s32.totalorder %s39, 0
      %p66 = por %p64, %p65
      %s67 = ssub.s32 %s33, %s40
      %p68 = scmp.eq.s32.totalorder %s67, 0
      %s70 = sadd.s32 %s69, 1
      %s71 = scalar_select %p68, %s69, %s70
      %p74 = pneg %p68
      %p75 = scmp.eq.s32.totalorder %s33, 1
      %p76 = por %p74, %p75
      %p77 = scmp.ne.s32.totalorder %s69, %s72
      %p78 = scmp.eq.s32.totalorder %s33, 0
      %p79 = por %p77, %p78
      %p80 = scmp.ne.s32.totalorder %s69, %s72
      %p81 = scmp.eq.s32.totalorder %s38, 1
      %p82 = por %p80, %p81
      %p83 = scmp.ne.s32.totalorder %s72, %s73
      %p84 = scmp.eq.s32.totalorder %s38, 0
      %p85 = por %p83, %p84
      %p86 = scmp.ne.s32.totalorder %s72, %s73
      %p87 = scmp.eq.s32.totalorder %s39, 1
      %p88 = por %p86, %p87
      %p90 = scmp.ne.s32.totalorder %s73, %s89
      %p91 = scmp.eq.s32.totalorder %s39, 0
      %p92 = por %p90, %p91
      %s94 = sadd.s32 %s93, 1
      %p97 = scmp.eq.s32.totalorder %s33, 1
      %p98 = scmp.ne.s32.totalorder %s93, %s95
      %p99 = scmp.eq.s32.totalorder %s33, 0
      %p100 = por %p98, %p99
      %p101 = scmp.ne.s32.totalorder %s93, %s95
      %p102 = scmp.eq.s32.totalorder %s38, 1
      %p103 = por %p101, %p102
      %p104 = scmp.ne.s32.totalorder %s95, %s96
      %p105 = scmp.eq.s32.totalorder %s38, 0
      %p106 = por %p104, %p105
      %p107 = scmp.ne.s32.totalorder %s95, %s96
      %p108 = scmp.eq.s32.totalorder %s39, 1
      %p109 = por %p107, %p108
      %p111 = scmp.ne.s32.totalorder %s96, %s110
      %p112 = scmp.eq.s32.totalorder %s39, 0
      %p113 = por %p111, %p112
      %s115 = sadd.s32 %s114, 1
      %p118 = scmp.eq.s32.totalorder %s33, 1
      %p119 = scmp.ne.s32.totalorder %s114, %s116
      %p120 = scmp.eq.s32.totalorder %s33, 0
      %p121 = por %p119, %p120
      %p122 = scmp.ne.s32.totalorder %s114, %s116
      %p123 = scmp.eq.s32.totalorder %s38, 1
      %p124 = por %p122, %p123
      %p125 = scmp.ne.s32.totalorder %s116, %s117
      %p126 = scmp.eq.s32.totalorder %s38, 0
      %p127 = por %p125, %p126
      %p128 = scmp.ne.s32.totalorder %s116, %s117
      %p129 = scmp.eq.s32.totalorder %s39, 1
      %p130 = por %p128, %p129
      %p132 = scmp.ne.s32.totalorder %s117, %s131
      %p133 = scmp.eq.s32.totalorder %s39, 0
      %p134 = por %p132, %p133
      %s136 = sadd.s32 %s135, 1
      %p139 = scmp.eq.s32.totalorder %s33, 1
      %p140 = scmp.ne.s32.totalorder %s135, %s137
      %p141 = scmp.eq.s32.totalorder %s33, 0
      %p142 = por %p140, %p141
      %p143 = scmp.ne.s32.totalorder %s135, %s137
      %p144 = scmp.eq.s32.totalorder %s38, 1
      %p145 = por %p143, %p144
      %p146 = scmp.ne.s32.totalorder %s137, %s138
      %p147 = scmp.eq.s32.totalorder %s38, 0
      %p148 = por %p146, %p147
      %p149 = scmp.ne.s32.totalorder %s137, %s138
      %p150 = scmp.eq.s32.totalorder %s39, 1
      %p151 = por %p149, %p150
      %p153 = scmp.ne.s32.totalorder %s138, %s152
      %p154 = scmp.eq.s32.totalorder %s39, 0
      %p155 = por %p153, %p154
      %s157 = sadd.s32 %s156, 1
      %p160 = scmp.eq.s32.totalorder %s33, 1
      %p161 = scmp.ne.s32.totalorder %s156, %s158
      %p162 = scmp.eq.s32.totalorder %s33, 0
      %p163 = por %p161, %p162
      %p164 = scmp.ne.s32.totalorder %s156, %s158
      %p165 = scmp.eq.s32.totalorder %s38, 1
      %p166 = por %p164, %p165
      %p167 = scmp.ne.s32.totalorder %s158, %s159
      %p168 = scmp.eq.s32.totalorder %s38, 0
      %p169 = por %p167, %p168
      %p170 = scmp.ne.s32.totalorder %s158, %s159
      %p171 = scmp.eq.s32.totalorder %s39, 1
      %p172 = por %p170, %p171
      %p174 = scmp.ne.s32.totalorder %s159, %s173
      %p175 = scmp.eq.s32.totalorder %s39, 0
      %p176 = por %p174, %p175
      %s178 = sadd.s32 %s177, 1
      %p181 = scmp.eq.s32.totalorder %s33, 1
      %p182 = scmp.ne.s32.totalorder %s177, %s179
      %p183 = scmp.eq.s32.totalorder %s33, 0
      %p184 = por %p182, %p183
      %p185 = scmp.ne.s32.totalorder %s177, %s179
      %p186 = scmp.eq.s32.totalorder %s38, 1
      %p187 = por %p185, %p186
      %p188 = scmp.ne.s32.totalorder %s179, %s180
      %p189 = scmp.eq.s32.totalorder %s38, 0
      %p190 = por %p188, %p189
      %p191 = scmp.ne.s32.totalorder %s179, %s180
      %p192 = scmp.eq.s32.totalorder %s39, 1
      %p193 = por %p191, %p192
      %p195 = scmp.ne.s32.totalorder %s180, %s194
      %p196 = scmp.eq.s32.totalorder %s39, 0
      %p197 = por %p195, %p196
      %s199 = sadd.s32 %s198, 1
      %p202 = scmp.eq.s32.totalorder %s33, 1
      %p203 = scmp.ne.s32.totalorder %s198, %s200
      %p204 = scmp.eq.s32.totalorder %s33, 0
      %p205 = por %p203, %p204
      %p206 = scmp.ne.s32.totalorder %s198, %s200
      %p207 = scmp.eq.s32.totalorder %s38, 1
      %p208 = por %p206, %p207
      %p209 = scmp.ne.s32.totalorder %s200, %s201
      %p210 = scmp.eq.s32.totalorder %s38, 0
      %p211 = por %p209, %p210
      %p212 = scmp.ne.s32.totalorder %s200, %s201
      %p213 = scmp.eq.s32.totalorder %s39, 1
      %p214 = por %p212, %p213
      %p216 = scmp.ne.s32.totalorder %s201, %s215
      %p217 = scmp.eq.s32.totalorder %s39, 0
      %p218 = por %p216, %p217
      %s220 = sadd.s32 %s219, 1
      %p223 = scmp.eq.s32.totalorder %s33, 1
      %p224 = scmp.ne.s32.totalorder %s219, %s221
      %p225 = scmp.eq.s32.totalorder %s33, 0
      %p226 = por %p224, %p225
      %p227 = scmp.ne.s32.totalorder %s219, %s221
      %p228 = scmp.eq.s32.totalorder %s38, 1
      %p229 = por %p227, %p228
      %p230 = scmp.ne.s32.totalorder %s221, %s222
      %p231 = scmp.eq.s32.totalorder %s38, 0
      %p232 = por %p230, %p231
      %p233 = scmp.ne.s32.totalorder %s221, %s222
      %p234 = scmp.eq.s32.totalorder %s39, 1
      %p235 = por %p233, %p234
      %p237 = scmp.ne.s32.totalorder %s222, %s236
      %p238 = scmp.eq.s32.totalorder %s39, 0
      %p239 = por %p237, %p238
      %s241 = sadd.s32 %s240, 1
      %p244 = scmp.eq.s32.totalorder %s33, 1
      %p245 = scmp.ne.s32.totalorder %s240, %s242
      %p246 = scmp.eq.s32.totalorder %s33, 0
      %p247 = por %p245, %p246
      %p248 = scmp.ne.s32.totalorder %s240, %s242
      %p249 = scmp.eq.s32.totalorder %s38, 1
      %p250 = por %p248, %p249
      %p251 = scmp.ne.s32.totalorder %s242, %s243
      %p252 = scmp.eq.s32.totalorder %s38, 0
      %p253 = por %p251, %p252
      %p254 = scmp.ne.s32.totalorder %s242, %s243
      %p255 = scmp.eq.s32.totalorder %s39, 1
      %p256 = por %p254, %p255
      %p258 = scmp.ne.s32.totalorder %s243, %s257
      %p259 = scmp.eq.s32.totalorder %s39, 0
      %p260 = por %p258, %p259
      %s262 = sadd.s32 %s261, 1
      %p265 = scmp.eq.s32.totalorder %s33, 1
      %p266 = scmp.ne.s32.totalorder %s261, %s263
      %p267 = scmp.eq.s32.totalorder %s33, 0
      %p268 = por %p266, %p267
      %p269 = scmp.ne.s32.totalorder %s261, %s263
      %p270 = scmp.eq.s32.totalorder %s38, 1
      %p271 = por %p269, %p270
      %p272 = scmp.ne.s32.totalorder %s263, %s264
      %p273 = scmp.eq.s32.totalorder %s38, 0
      %p274 = por %p272, %p273
      %p275 = scmp.ne.s32.totalorder %s263, %s264
      %p276 = scmp.eq.s32.totalorder %s39, 1
      %p277 = por %p275, %p276
      %p279 = scmp.ne.s32.totalorder %s264, %s278
      %p280 = scmp.eq.s32.totalorder %s39, 0
      %p281 = por %p279, %p280
      %s283 = sadd.s32 %s282, 1
      %p286 = scmp.eq.s32.totalorder %s33, 1
      %p287 = scmp.ne.s32.totalorder %s282, %s284
      %p288 = scmp.eq.s32.totalorder %s33, 0
      %p289 = por %p287, %p288
      %p290 = scmp.ne.s32.totalorder %s282, %s284
      %p291 = scmp.eq.s32.totalorder %s38, 1
      %p292 = por %p290, %p291
      %p293 = scmp.ne.s32.totalorder %s284, %s285
      %p294 = scmp.eq.s32.totalorder %s38, 0
      %p295 = por %p293, %p294
      %p296 = scmp.ne.s32.totalorder %s284, %s285
      %p297 = scmp.eq.s32.totalorder %s39, 1
      %p298 = por %p296, %p297
      %p300 = scmp.ne.s32.totalorder %s285, %s299
      %p301 = scmp.eq.s32.totalorder %s39, 0
      %p302 = por %p300, %p301
      %s303 = ssub.s32 %s33, %s40
      %p304 = scmp.eq.s32.totalorder %s303, 0
      %s306 = sadd.s32 %s305, 1
      %s307 = scalar_select %p304, %s305, %s306
      %p310 = pneg %p304
      %p311 = scmp.eq.s32.totalorder %s33, 1
      %p312 = por %p310, %p311
      %p313 = scmp.ne.s32.totalorder %s305, %s308
      %p314 = scmp.eq.s32.totalorder %s33, 0
      %p315 = por %p313, %p314
      %p316 = scmp.ne.s32.totalorder %s305, %s308
      %p317 = scmp.eq.s32.totalorder %s38, 1
      %p318 = por %p316, %p317
      %p319 = scmp.ne.s32.totalorder %s308, %s309
      %p320 = scmp.eq.s32.totalorder %s38, 0
      %p321 = por %p319, %p320
      %p322 = scmp.ne.s32.totalorder %s308, %s309
      %p323 = scmp.eq.s32.totalorder %s39, 1
      %p324 = por %p322, %p323
      %p326 = scmp.ne.s32.totalorder %s309, %s325
      %p327 = scmp.eq.s32.totalorder %s39, 0
      %p328 = por %p326, %p327
      %s329 = ssub.s32 %s33, %s40
      %p330 = scmp.eq.s32.totalorder %s329, 0
      %s332 = sadd.s32 %s331, 1
      %s333 = scalar_select %p330, %s331, %s332
      %p336 = pneg %p330
      %p337 = scmp.eq.s32.totalorder %s33, 1
      %p338 = por %p336, %p337
      %p339 = scmp.ne.s32.totalorder %s331, %s334
      %p340 = scmp.eq.s32.totalorder %s33, 0
      %p341 = por %p339, %p340
      %p342 = scmp.ne.s32.totalorder %s331, %s334
      %p343 = scmp.eq.s32.totalorder %s38, 1
      %p344 = por %p342, %p343
      %p345 = scmp.ne.s32.totalorder %s334, %s335
      %p346 = scmp.eq.s32.totalorder %s38, 0
      %p347 = por %p345, %p346
      %p348 = scmp.ne.s32.totalorder %s334, %s335
      %p349 = scmp.eq.s32.totalorder %s39, 1
      %p350 = por %p348, %p349
      %p352 = scmp.ne.s32.totalorder %s335, %s351
      %p353 = scmp.eq.s32.totalorder %s39, 0
      %p354 = por %p352, %p353
      %s355 = ssub.s32 %s33, %s40
      %p356 = scmp.eq.s32.totalorder %s355, 0
      %s358 = sadd.s32 %s357, 1
      %s359 = scalar_select %p356, %s357, %s358
      %p362 = pneg %p356
      %p363 = scmp.eq.s32.totalorder %s33, 1
      %p364 = por %p362, %p363
      %p365 = scmp.ne.s32.totalorder %s357, %s360
      %p366 = scmp.eq.s32.totalorder %s33, 0
      %p367 = por %p365, %p366
      %p368 = scmp.ne.s32.totalorder %s357, %s360
      %p369 = scmp.eq.s32.totalorder %s38, 1
      %p370 = por %p368, %p369
      %p371 = scmp.ne.s32.totalorder %s360, %s361
      %p372 = scmp.eq.s32.totalorder %s38, 0
      %p373 = por %p371, %p372
      %p374 = scmp.ne.s32.totalorder %s360, %s361
      %p375 = scmp.eq.s32.totalorder %s39, 1
      %p376 = por %p374, %p375
      %p378 = scmp.ne.s32.totalorder %s361, %s377
      %p379 = scmp.eq.s32.totalorder %s39, 0
      %p380 = por %p378, %p379
      %p381 = scmp.le.s32.totalorder 1, %s33
      %p382 = scmp.lt.s32.totalorder %s33, 3
      %p383 = pnand %p381, %p382
      %p384 = pneg %p383
      // Predicated region
      $region9: #{tpu_custom_call.1} parent=5 // pred_check
        _
      $region10: #{tpu_custom_call.1} parent=5 // pred_check_branch
        %386 = sbr.rel (%p383) target = $region12
      $region11: #{tpu_custom_call.1} parent=5 // pred_region
        %s387 = ssub.s32 %s33, 1
        // Predicated region
        $region13: #{tpu_custom_call.1} parent=11 // pred_check
          %p388 = pneg %p106
        $region14: #{tpu_custom_call.1} parent=11 // pred_check_branch
          %390 = sbr.rel (%p388) target = $region16
        $region15: #{tpu_custom_call.1} parent=11 // pred_region
          _
        $region16: #{tpu_custom_call.1} parent=11 // pred_fallthru
          _
        // Predicated region
        $region17: #{tpu_custom_call.1} parent=11 // pred_check
          %p391 = pneg %p127
        $region18: #{tpu_custom_call.1} parent=11 // pred_check_branch
          %393 = sbr.rel (%p391) target = $region20
        $region19: #{tpu_custom_call.1} parent=11 // pred_region
          _
        $region20: #{tpu_custom_call.1} parent=11 // pred_fallthru
          _
        // Predicated region
        $region21: #{tpu_custom_call.1} parent=11 // pred_check
          %p394 = pneg %p148
        $region22: #{tpu_custom_call.1} parent=11 // pred_check_branch
          %396 = sbr.rel (%p394) target = $region24
        $region23: #{tpu_custom_call.1} parent=11 // pred_region
          _
        $region24: #{tpu_custom_call.1} parent=11 // pred_fallthru
          _
        // Predicated region
        $region25: #{tpu_custom_call.1} parent=11 // pred_check
          %p397 = pneg %p169
        $region26: #{tpu_custom_call.1} parent=11 // pred_check_branch
          %399 = sbr.rel (%p397) target = $region28
        $region27: #{tpu_custom_call.1} parent=11 // pred_region
          _
        $region28: #{tpu_custom_call.1} parent=11 // pred_fallthru
          _
        // Predicated region
        $region29: #{tpu_custom_call.1} parent=11 // pred_check
          %p400 = pneg %p190
        $region30: #{tpu_custom_call.1} parent=11 // pred_check_branch
          %402 = sbr.rel (%p400) target = $region32
        $region31: #{tpu_custom_call.1} parent=11 // pred_region
          _
        $region32: #{tpu_custom_call.1} parent=11 // pred_fallthru
          _
        // Predicated region
        $region33: #{tpu_custom_call.1} parent=11 // pred_check
          %p403 = pneg %p211
        $region34: #{tpu_custom_call.1} parent=11 // pred_check_branch
          %405 = sbr.rel (%p403) target = $region36
        $region35: #{tpu_custom_call.1} parent=11 // pred_region
          _
        $region36: #{tpu_custom_call.1} parent=11 // pred_fallthru
          _
        // Predicated region
        $region37: #{tpu_custom_call.1} parent=11 // pred_check
          %p406 = pneg %p232
        $region38: #{tpu_custom_call.1} parent=11 // pred_check_branch
          %408 = sbr.rel (%p406) target = $region40
        $region39: #{tpu_custom_call.1} parent=11 // pred_region
          _
        $region40: #{tpu_custom_call.1} parent=11 // pred_fallthru
          _
        // Predicated region
        $region41: #{tpu_custom_call.1} parent=11 // pred_check
          %p409 = pneg %p253
        $region42: #{tpu_custom_call.1} parent=11 // pred_check_branch
          %411 = sbr.rel (%p409) target = $region44
        $region43: #{tpu_custom_call.1} parent=11 // pred_region
          _
        $region44: #{tpu_custom_call.1} parent=11 // pred_fallthru
          _
        // Predicated region
        $region45: #{tpu_custom_call.1} parent=11 // pred_check
          %p412 = pneg %p274
        $region46: #{tpu_custom_call.1} parent=11 // pred_check_branch
          %414 = sbr.rel (%p412) target = $region48
        $region47: #{tpu_custom_call.1} parent=11 // pred_region
          %s416 = ssub.s32 1024, 1024
          %417 = vsyncadd [#allocation6], %s416
          %s418 = sshll.u32 [#allocation7], 4
          %s419 = int_to_ptr.vmem [resolvable:$true] %s418
          %424 = dma.hbm_to_vmem [thread:$0]  %s10, 1024, %s419, [#allocation6], 128, 128, 8
        $region48: #{tpu_custom_call.1} parent=11 // pred_fallthru
          _
        // Predicated region
        $region49: #{tpu_custom_call.1} parent=11 // pred_check
          %p425 = pneg %p295
        $region50: #{tpu_custom_call.1} parent=11 // pred_check_branch
          %427 = sbr.rel (%p425) target = $region52
        $region51: #{tpu_custom_call.1} parent=11 // pred_region
          _
        $region52: #{tpu_custom_call.1} parent=11 // pred_fallthru
          _
      $region12: #{tpu_custom_call.1} parent=5 // pred_fallthru
        _
      %p428 = scmp.lt.s32.totalorder %s33, 2
      // Predicated region
      $region53: #{tpu_custom_call.1} parent=5 // pred_check
        %p429 = pneg %p428
      $region54: #{tpu_custom_call.1} parent=5 // pred_check_branch
        %431 = sbr.rel (%p429) target = $region56
      $region55: #{tpu_custom_call.1} parent=5 // pred_region
        // Predicated region
        $region57: #{tpu_custom_call.1} parent=55 // pred_check
          %p432 = pneg %p53
        $region58: #{tpu_custom_call.1} parent=55 // pred_check_branch
          %434 = sbr.rel (%p432) target = $region60
        $region59: #{tpu_custom_call.1} parent=55 // pred_region
          %s435 = sand.u32 %s43, 1
          %s436 = scalar_lea.sflag [#allocation3], %s435
          %s437 = sand.u32 %s43, 1
          %s438 = smul.addr %s437, 8
          %s439 = scalar_lea.vmem [#allocation2], %s438
          %s441 = ssub.s32 128, 128
          %442 = vsyncadd %s436, %s441
          %s443 = smul.addr %s33, 128
          %s444 = scalar_lea.hbm %s0, %s443
          %s446 = sshll.u32 %s439, 4
          %s447 = int_to_ptr.vmem [resolvable:$true] %s446
          %449 = dma.hbm_to_vmem [thread:$0]  %s444, 128, %s447, %s436
        $region60: #{tpu_custom_call.1} parent=55 // pred_fallthru
          _
        // Predicated region
        $region61: #{tpu_custom_call.1} parent=55 // pred_check
          %p450 = pneg %p79
        $region62: #{tpu_custom_call.1} parent=55 // pred_check_branch
          %452 = sbr.rel (%p450) target = $region64
        $region63: #{tpu_custom_call.1} parent=55 // pred_region
          %s453 = sand.u32 %s33, 1
          %s454 = scalar_lea.sflag [#allocation6], %s453
          %s455 = sand.u32 %s69, 1
          %s456 = smul.addr %s455, 8
          %s457 = scalar_lea.vmem [#allocation5], %s456
          %s459 = ssub.s32 128, 128
          %460 = vsyncadd %s454, %s459
          %s461 = smul.addr %s33, 128
          %s462 = scalar_lea.hbm %s1, %s461
          %s464 = sshll.u32 %s457, 4
          %s465 = int_to_ptr.vmem [resolvable:$true] %s464
          %467 = dma.hbm_to_vmem [thread:$0]  %s462, 128, %s465, %s454
        $region64: #{tpu_custom_call.1} parent=55 // pred_fallthru
          _
      $region56: #{tpu_custom_call.1} parent=5 // pred_fallthru
        _
      %p468 = scmp.le.s32.totalorder 1, %s33
      %p469 = scmp.lt.s32.totalorder %s33, 3
      %p470 = pnand %p468, %p469
      %p471 = pneg %p470
      // Predicated region
      $region65: #{tpu_custom_call.1} parent=5 // pred_check
        _
      $region66: #{tpu_custom_call.1} parent=5 // pred_check_branch
        %473 = sbr.rel (%p470) target = $region68
      $region67: #{tpu_custom_call.1} parent=5 // pred_region
        %s474 = ssub.s32 %s33, 1
        %s475 = sand.u32 %s46, 1
        %s476 = scalar_lea.sflag [#allocation3], %s475
        %s477 = sand.u32 %s46, 1
        %s478 = smul.addr %s477, 8
        %s479 = scalar_lea.vmem [#allocation2], %s478
        // Predicated region
        $region69: #{tpu_custom_call.1} parent=67 // pred_check
          %p480 = pneg %p59
        $region70: #{tpu_custom_call.1} parent=67 // pred_check_branch
          %482 = sbr.rel (%p480) target = $region72
        $region71: #{tpu_custom_call.1} parent=67 // pred_region
          %483 = dma.done %s476, 128
        $region72: #{tpu_custom_call.1} parent=67 // pred_fallthru
          _
        %s484 = sand.u32 %s38, 1
        %s485 = scalar_lea.sflag [#allocation6], %s484
        %s486 = sand.u32 %s72, 1
        %s487 = smul.addr %s486, 8
        %s488 = scalar_lea.vmem [#allocation5], %s487
        // Predicated region
        $region73: #{tpu_custom_call.1} parent=67 // pred_check
          %p489 = pneg %p85
        $region74: #{tpu_custom_call.1} parent=67 // pred_check_branch
          %491 = sbr.rel (%p489) target = $region76
        $region75: #{tpu_custom_call.1} parent=67 // pred_region
          %492 = dma.done %s485, 128
        $region76: #{tpu_custom_call.1} parent=67 // pred_fallthru
          _
        // Predicated region
        $region77: #{tpu_custom_call.1} parent=67 // pred_check
          %p493 = pneg %p274
        $region78: #{tpu_custom_call.1} parent=67 // pred_check_branch
          %495 = sbr.rel (%p493) target = $region80
        $region79: #{tpu_custom_call.1} parent=67 // pred_region
          %496 = dma.done [#allocation6], 1024
        $region80: #{tpu_custom_call.1} parent=67 // pred_fallthru
          _
        %s497 = sand.u32 %s46, 1
        %s498 = scalar_lea.sflag [#allocation3], %s497
        %s499 = sand.u32 %s46, 1
        %s500 = smul.addr %s499, 8
        %s501 = scalar_lea.vmem [#allocation2], %s500
        %p502 = pneg %p59
        %p503 = pneg %p56
        %s504 = sand.u32 %s38, 1
        %s505 = scalar_lea.sflag [#allocation6], %s504
        %s506 = sand.u32 %s72, 1
        %s507 = smul.addr %s506, 8
        %s508 = scalar_lea.vmem [#allocation5], %s507
        %p509 = pneg %p85
        %p510 = pneg %p82
        %p511 = pneg %p106
        %p512 = pneg %p103
        %p513 = pneg %p127
        %p514 = pneg %p124
        %p515 = pneg %p148
        %p516 = pneg %p145
        %p517 = pneg %p169
        %p518 = pneg %p166
        %p519 = pneg %p190
        %p520 = pneg %p187
        %p521 = pneg %p211
        %p522 = pneg %p208
        %p523 = pneg %p232
        %p524 = pneg %p229
        %p525 = pneg %p253
        %p526 = pneg %p250
        %p527 = pneg %p274
        %p528 = pneg %p271
        %p529 = pneg %p295
        %p530 = pneg %p292
        %p531 = pneg %p321
        %p532 = pneg %p318
        %s533 = sand.u32 %s308, 1
        %s534 = scalar_lea.sflag [#allocation4], %s533
        %s535 = sand.u32 %s308, 1
        %s536 = smul.addr %s535, 8
        %s537 = scalar_lea.vmem [#allocation8], %s536
        %p538 = pneg %p347
        %p539 = pneg %p344
        %s540 = sand.u32 %s38, 1
        %s541 = scalar_lea.sflag [#allocation10], %s540
        %s542 = sand.u32 %s334, 1
        %s543 = smul.addr %s542, 8
        %s544 = scalar_lea.vmem [#allocation9], %s543
        %p545 = pneg %p373
        %p546 = pneg %p370
        %s547 = sand.u32 %s38, 1
        %s548 = scalar_lea.sflag [#allocation10], %s547
        %s549 = sand.u32 %s360, 1
        %s550 = smul.addr %s549, 8
        %s551 = scalar_lea.vmem [#allocation11], %s550
        %v552 = vld [vmem:[%s479] sm:$0xff]
        %v553 = vld [vmem:[%s2] sm:$0xff]
        %v554 = vld [vmem:[%s2 + $0x8] sm:$0xff]
        %v555 = vld [vmem:[%s2 + $0x10] sm:$0xff]
        %v556 = vld [vmem:[%s2 + $0x18] sm:$0xff]
        %v557 = vld [vmem:[%s2 + $0x20] sm:$0xff]
        %v558 = vld [vmem:[%s2 + $0x28] sm:$0xff]
        %v559 = vld [vmem:[%s2 + $0x30] sm:$0xff]
        %v560 = vld [vmem:[%s2 + $0x38] sm:$0xff]
        %v561 = vld [vmem:[%s2 + $0x40] sm:$0xff]
        %v562 = vld [vmem:[%s2 + $0x48] sm:$0xff]
        %v563 = vld [vmem:[%s2 + $0x50] sm:$0xff]
        %v564 = vld [vmem:[%s2 + $0x58] sm:$0xff]
        %v565 = vld [vmem:[%s2 + $0x60] sm:$0xff]
        %v566 = vld [vmem:[%s2 + $0x68] sm:$0xff]
        %v567 = vld [vmem:[%s2 + $0x70] sm:$0xff]
        %v568 = vld [vmem:[%s2 + $0x78] sm:$0xff]
        %v569 = vld [vmem:[%s3] sm:$0x1]
        %v571 = vlaneseq
        %v572 = vshrl.u32 %v571, 7
        %v573 = vsub.s32 0, %v572
        %v574 = vrot.slane %v569, %v573
        %576 = vmatprep.subr.mxu0 0.0
        %577 = vmatpush1.msra.mxu0 %v553
        %578 = vmatprep.subr.mxu0 0.0
        %579 = vmatpush1.msra.mxu0 %v554
        %580 = vmatprep.subr.mxu0 0.0
        %581 = vmatpush1.msra.mxu0 %v555
        %582 = vmatprep.subr.mxu0 0.0
        %583 = vmatpush1.msra.mxu0 %v556
        %584 = vmatprep.subr.mxu0 0.0
        %585 = vmatpush1.msra.mxu0 %v557
        %586 = vmatprep.subr.mxu0 0.0
        %587 = vmatpush1.msra.mxu0 %v558
        %588 = vmatprep.subr.mxu0 0.0
        %589 = vmatpush1.msra.mxu0 %v559
        %590 = vmatprep.subr.mxu0 0.0
        %591 = vmatpush1.msra.mxu0 %v560
        %592 = vmatprep.subr.mxu0 0.0
        %593 = vmatpush1.msra.mxu0 %v561
        %594 = vmatprep.subr.mxu0 0.0
        %595 = vmatpush1.msra.mxu0 %v562
        %596 = vmatprep.subr.mxu0 0.0
        %597 = vmatpush1.msra.mxu0 %v563
        %598 = vmatprep.subr.mxu0 0.0
        %599 = vmatpush1.msra.mxu0 %v564
        %600 = vmatprep.subr.mxu0 0.0
        %601 = vmatpush1.msra.mxu0 %v565
        %602 = vmatprep.subr.mxu0 0.0
        %603 = vmatpush1.msra.mxu0 %v566
        %604 = vmatprep.subr.mxu0 0.0
        %605 = vmatpush1.msra.mxu0 %v567
        %606 = vmatprep.subr.mxu0 0.0
        %607 = vmatpush1.msra.mxu0 %v568
        %608 = vmatprep.subr.mxu0 0.0
        %609 = vmatpush1.msra.mxu0 0.0
        %610 = vmatprep.subr.mxu0 0.0
        %611 = vmatpush1.msra.mxu0 0.0
        %612 = vmatprep.subr.mxu0 0.0
        %613 = vmatpush1.msra.mxu0 0.0
        %614 = vmatprep.subr.mxu0 0.0
        %615 = vmatpush1.msra.mxu0 0.0
        %616 = vmatprep.subr.mxu0 0.0
        %617 = vmatpush1.msra.mxu0 0.0
        %618 = vmatprep.subr.mxu0 0.0
        %619 = vmatpush1.msra.mxu0 0.0
        %620 = vmatprep.subr.mxu0 0.0
        %621 = vmatpush1.msra.mxu0 0.0
        %622 = vmatprep.subr.mxu0 0.0
        %623 = vmatpush1.msra.mxu0 0.0
        %624 = vmatprep.subr.mxu0 0.0
        %625 = vmatpush1.msra.mxu0 0.0
        %626 = vmatprep.subr.mxu0 0.0
        %627 = vmatpush1.msra.mxu0 0.0
        %628 = vmatprep.subr.mxu0 0.0
        %629 = vmatpush1.msra.mxu0 0.0
        %630 = vmatprep.subr.mxu0 0.0
        %631 = vmatpush1.msra.mxu0 0.0
        %632 = vmatprep.subr.mxu0 0.0
        %633 = vmatpush1.msra.mxu0 0.0
        %634 = vmatprep.subr.mxu0 0.0
        %635 = vmatpush1.msra.mxu0 0.0
        %636 = vmatprep.subr.mxu0 0.0
        %637 = vmatpush1.msra.mxu0 0.0
        %638 = vmatprep.subr.mxu0 0.0
        %639 = vmatpush1.msra.mxu0 0.0
        %640 = vmatprep.mubr.f32.mxu0 0.0
        %641 = vmatmul.mubr.f32.gmra.mrb[0].mxu0 %v552
        %v642 = vpop.f32.mrb[0].mxu0
        %v643 = vadd.f32 %v574, %v642
        %v644 = vpop.f32.mrb[0].mxu0
        %645 = vdwg.mxu0
        %v646 = vmax.f32 %v643, 0.0
        %v647 = vld [vmem:[%s4] sm:$0xff]
        %v648 = vld [vmem:[%s4 + $0x8] sm:$0xff]
        %v649 = vld [vmem:[%s4 + $0x10] sm:$0xff]
        %v650 = vld [vmem:[%s4 + $0x18] sm:$0xff]
        %v651 = vld [vmem:[%s4 + $0x20] sm:$0xff]
        %v652 = vld [vmem:[%s4 + $0x28] sm:$0xff]
        %v653 = vld [vmem:[%s4 + $0x30] sm:$0xff]
        %v654 = vld [vmem:[%s4 + $0x38] sm:$0xff]
        %v655 = vld [vmem:[%s5] sm:$0x1]
        %v657 = vlaneseq
        %v658 = vshrl.u32 %v657, 7
        %v659 = vsub.s32 0, %v658
        %v660 = vrot.slane %v655, %v659
        %vm662 = vcmask 523264
        %v664 = vsel %vm662, %v646, 0
        %666 = vmatprep.subr.mxu0 0.0
        %667 = vmatpush1.msra.mxu0 %v647
        %668 = vmatprep.subr.mxu0 0.0
        %669 = vmatpush1.msra.mxu0 %v648
        %670 = vmatprep.subr.mxu0 0.0
        %671 = vmatpush1.msra.mxu0 %v649
        %672 = vmatprep.subr.mxu0 0.0
        %673 = vmatpush1.msra.mxu0 %v650
        %674 = vmatprep.subr.mxu0 0.0
        %675 = vmatpush1.msra.mxu0 %v651
        %676 = vmatprep.subr.mxu0 0.0
        %677 = vmatpush1.msra.mxu0 %v652
        %678 = vmatprep.subr.mxu0 0.0
        %679 = vmatpush1.msra.mxu0 %v653
        %680 = vmatprep.subr.mxu0 0.0
        %681 = vmatpush1.msra.mxu0 %v654
        %682 = vmatprep.subr.mxu0 0.0
        %683 = vmatpush1.msra.mxu0 0.0
        %684 = vmatprep.subr.mxu0 0.0
        %685 = vmatpush1.msra.mxu0 0.0
        %686 = vmatprep.subr.mxu0 0.0
        %687 = vmatpush1.msra.mxu0 0.0
        %688 = vmatprep.subr.mxu0 0.0
        %689 = vmatpush1.msra.mxu0 0.0
        %690 = vmatprep.subr.mxu0 0.0
        %691 = vmatpush1.msra.mxu0 0.0
        %692 = vmatprep.subr.mxu0 0.0
        %693 = vmatpush1.msra.mxu0 0.0
        %694 = vmatprep.subr.mxu0 0.0
        %695 = vmatpush1.msra.mxu0 0.0
        %696 = vmatprep.subr.mxu0 0.0
        %697 = vmatpush1.msra.mxu0 0.0
        %698 = vmatprep.subr.mxu0 0.0
        %699 = vmatpush1.msra.mxu0 0.0
        %700 = vmatprep.subr.mxu0 0.0
        %701 = vmatpush1.msra.mxu0 0.0
        %702 = vmatprep.subr.mxu0 0.0
        %703 = vmatpush1.msra.mxu0 0.0
        %704 = vmatprep.subr.mxu0 0.0
        %705 = vmatpush1.msra.mxu0 0.0
        %706 = vmatprep.subr.mxu0 0.0
        %707 = vmatpush1.msra.mxu0 0.0
        %708 = vmatprep.subr.mxu0 0.0
        %709 = vmatpush1.msra.mxu0 0.0
        %710 = vmatprep.subr.mxu0 0.0
        %711 = vmatpush1.msra.mxu0 0.0
        %712 = vmatprep.subr.mxu0 0.0
        %713 = vmatpush1.msra.mxu0 0.0
        %714 = vmatprep.subr.mxu0 0.0
        %715 = vmatpush1.msra.mxu0 0.0
        %716 = vmatprep.subr.mxu0 0.0
        %717 = vmatpush1.msra.mxu0 0.0
        %718 = vmatprep.subr.mxu0 0.0
        %719 = vmatpush1.msra.mxu0 0.0
        %720 = vmatprep.subr.mxu0 0.0
        %721 = vmatpush1.msra.mxu0 0.0
        %722 = vmatprep.subr.mxu0 0.0
        %723 = vmatpush1.msra.mxu0 0.0
        %724 = vmatprep.subr.mxu0 0.0
        %725 = vmatpush1.msra.mxu0 0.0
        %726 = vmatprep.subr.mxu0 0.0
        %727 = vmatpush1.msra.mxu0 0.0
        %728 = vmatprep.subr.mxu0 0.0
        %729 = vmatpush1.msra.mxu0 0.0
        %730 = vmatprep.mubr.f32.mxu0 0.0
        %731 = vmatmul.mubr.f32.gmra.mrb[0].mxu0 %v664
        %v732 = vpop.f32.mrb[0].mxu0
        %v733 = vadd.f32 %v660, %v732
        %v734 = vpop.f32.mrb[0].mxu0
        %735 = vdwg.mxu0
        %v736 = vld [vmem:[%s6] sm:$0xff]
        %v737 = vld [vmem:[%s6 + $0x8] sm:$0xff]
        %v738 = vld [vmem:[%s6 + $0x10] sm:$0xff]
        %v739 = vld [vmem:[%s6 + $0x18] sm:$0xff]
        %v740 = vld [vmem:[%s6 + $0x20] sm:$0xff]
        %v741 = vld [vmem:[%s6 + $0x28] sm:$0xff]
        %v742 = vld [vmem:[%s6 + $0x30] sm:$0xff]
        %v743 = vld [vmem:[%s6 + $0x38] sm:$0xff]
        %v744 = vld [vmem:[%s7] sm:$0x1]
        %v746 = vlaneseq
        %v747 = vshrl.u32 %v746, 7
        %v748 = vsub.s32 0, %v747
        %v749 = vrot.slane %v744, %v748
        %751 = vmatprep.subr.mxu0 0.0
        %752 = vmatpush1.msra.mxu0 %v736
        %753 = vmatprep.subr.mxu0 0.0
        %754 = vmatpush1.msra.mxu0 %v737
        %755 = vmatprep.subr.mxu0 0.0
        %756 = vmatpush1.msra.mxu0 %v738
        %757 = vmatprep.subr.mxu0 0.0
        %758 = vmatpush1.msra.mxu0 %v739
        %759 = vmatprep.subr.mxu0 0.0
        %760 = vmatpush1.msra.mxu0 %v740
        %761 = vmatprep.subr.mxu0 0.0
        %762 = vmatpush1.msra.mxu0 %v741
        %763 = vmatprep.subr.mxu0 0.0
        %764 = vmatpush1.msra.mxu0 %v742
        %765 = vmatprep.subr.mxu0 0.0
        %766 = vmatpush1.msra.mxu0 %v743
        %767 = vmatprep.subr.mxu0 0.0
        %768 = vmatpush1.msra.mxu0 0.0
        %769 = vmatprep.subr.mxu0 0.0
        %770 = vmatpush1.msra.mxu0 0.0
        %771 = vmatprep.subr.mxu0 0.0
        %772 = vmatpush1.msra.mxu0 0.0
        %773 = vmatprep.subr.mxu0 0.0
        %774 = vmatpush1.msra.mxu0 0.0
        %775 = vmatprep.subr.mxu0 0.0
        %776 = vmatpush1.msra.mxu0 0.0
        %777 = vmatprep.subr.mxu0 0.0
        %778 = vmatpush1.msra.mxu0 0.0
        %779 = vmatprep.subr.mxu0 0.0
        %780 = vmatpush1.msra.mxu0 0.0
        %781 = vmatprep.subr.mxu0 0.0
        %782 = vmatpush1.msra.mxu0 0.0
        %783 = vmatprep.subr.mxu0 0.0
        %784 = vmatpush1.msra.mxu0 0.0
        %785 = vmatprep.subr.mxu0 0.0
        %786 = vmatpush1.msra.mxu0 0.0
        %787 = vmatprep.subr.mxu0 0.0
        %788 = vmatpush1.msra.mxu0 0.0
        %789 = vmatprep.subr.mxu0 0.0
        %790 = vmatpush1.msra.mxu0 0.0
        %791 = vmatprep.subr.mxu0 0.0
        %792 = vmatpush1.msra.mxu0 0.0
        %793 = vmatprep.subr.mxu0 0.0
        %794 = vmatpush1.msra.mxu0 0.0
        %795 = vmatprep.subr.mxu0 0.0
        %796 = vmatpush1.msra.mxu0 0.0
        %797 = vmatprep.subr.mxu0 0.0
        %798 = vmatpush1.msra.mxu0 0.0
        %799 = vmatprep.subr.mxu0 0.0
        %800 = vmatpush1.msra.mxu0 0.0
        %801 = vmatprep.subr.mxu0 0.0
        %802 = vmatpush1.msra.mxu0 0.0
        %803 = vmatprep.subr.mxu0 0.0
        %804 = vmatpush1.msra.mxu0 0.0
        %805 = vmatprep.subr.mxu0 0.0
        %806 = vmatpush1.msra.mxu0 0.0
        %807 = vmatprep.subr.mxu0 0.0
        %808 = vmatpush1.msra.mxu0 0.0
        %809 = vmatprep.subr.mxu0 0.0
        %810 = vmatpush1.msra.mxu0 0.0
        %811 = vmatprep.subr.mxu0 0.0
        %812 = vmatpush1.msra.mxu0 0.0
        %813 = vmatprep.subr.mxu0 0.0
        %814 = vmatpush1.msra.mxu0 0.0
        %815 = vmatprep.mubr.f32.mxu0 0.0
        %816 = vmatmul.mubr.f32.gmra.mrb[0].mxu0 %v664
        %v817 = vpop.f32.mrb[0].mxu0
        %v818 = vadd.f32 %v749, %v817
        %v819 = vpop.f32.mrb[0].mxu0
        %820 = vdwg.mxu0
        %v821 = vld [vmem:[%s488] sm:$0xff]
        %v822 = vmul.f32 %v818, 0.5
        %v823 = vmul.f32 %v822, 1.442695
        %v824 = vpow.pop %v823
        %v825 = vmul.f32 %v821, %v824
        %v826 = vadd.f32 %v733, %v825
        %v827 = vld [vmem:[%s8] sm:$0xff]
        %v828 = vld [vmem:[%s8 + $0x8] sm:$0xff]
        %v829 = vld [vmem:[%s8 + $0x10] sm:$0xff]
        %v830 = vld [vmem:[%s8 + $0x18] sm:$0xff]
        %v831 = vld [vmem:[%s8 + $0x20] sm:$0xff]
        %v832 = vld [vmem:[%s8 + $0x28] sm:$0xff]
        %v833 = vld [vmem:[%s8 + $0x30] sm:$0xff]
        %v834 = vld [vmem:[%s8 + $0x38] sm:$0xff]
        %v835 = vld [vmem:[%s9] sm:$0x1]
        %v837 = vlaneseq
        %v838 = vshrl.u32 %v837, 7
        %v839 = vsub.s32 0, %v838
        %v840 = vrot.slane %v835, %v839
        %v843 = vsel %vm662, %v826, 0
        %845 = vmatprep.subr.mxu0 0.0
        %846 = vmatpush1.msra.mxu0 %v827
        %847 = vmatprep.subr.mxu0 0.0
        %848 = vmatpush1.msra.mxu0 %v828
        %849 = vmatprep.subr.mxu0 0.0
        %850 = vmatpush1.msra.mxu0 %v829
        %851 = vmatprep.subr.mxu0 0.0
        %852 = vmatpush1.msra.mxu0 %v830
        %853 = vmatprep.subr.mxu0 0.0
        %854 = vmatpush1.msra.mxu0 %v831
        %855 = vmatprep.subr.mxu0 0.0
        %856 = vmatpush1.msra.mxu0 %v832
        %857 = vmatprep.subr.mxu0 0.0
        %858 = vmatpush1.msra.mxu0 %v833
        %859 = vmatprep.subr.mxu0 0.0
        %860 = vmatpush1.msra.mxu0 %v834
        %861 = vmatprep.subr.mxu0 0.0
        %862 = vmatpush1.msra.mxu0 0.0
        %863 = vmatprep.subr.mxu0 0.0
        %864 = vmatpush1.msra.mxu0 0.0
        %865 = vmatprep.subr.mxu0 0.0
        %866 = vmatpush1.msra.mxu0 0.0
        %867 = vmatprep.subr.mxu0 0.0
        %868 = vmatpush1.msra.mxu0 0.0
        %869 = vmatprep.subr.mxu0 0.0
        %870 = vmatpush1.msra.mxu0 0.0
        %871 = vmatprep.subr.mxu0 0.0
        %872 = vmatpush1.msra.mxu0 0.0
        %873 = vmatprep.subr.mxu0 0.0
        %874 = vmatpush1.msra.mxu0 0.0
        %875 = vmatprep.subr.mxu0 0.0
        %876 = vmatpush1.msra.mxu0 0.0
        %877 = vmatprep.subr.mxu0 0.0
        %878 = vmatpush1.msra.mxu0 0.0
        %879 = vmatprep.subr.mxu0 0.0
        %880 = vmatpush1.msra.mxu0 0.0
        %881 = vmatprep.subr.mxu0 0.0
        %882 = vmatpush1.msra.mxu0 0.0
        %883 = vmatprep.subr.mxu0 0.0
        %884 = vmatpush1.msra.mxu0 0.0
        %885 = vmatprep.subr.mxu0 0.0
        %886 = vmatpush1.msra.mxu0 0.0
        %887 = vmatprep.subr.mxu0 0.0
        %888 = vmatpush1.msra.mxu0 0.0
        %889 = vmatprep.subr.mxu0 0.0
        %890 = vmatpush1.msra.mxu0 0.0
        %891 = vmatprep.subr.mxu0 0.0
        %892 = vmatpush1.msra.mxu0 0.0
        %893 = vmatprep.subr.mxu0 0.0
        %894 = vmatpush1.msra.mxu0 0.0
        %895 = vmatprep.subr.mxu0 0.0
        %896 = vmatpush1.msra.mxu0 0.0
        %897 = vmatprep.subr.mxu0 0.0
        %898 = vmatpush1.msra.mxu0 0.0
        %899 = vmatprep.subr.mxu0 0.0
        %900 = vmatpush1.msra.mxu0 0.0
        %901 = vmatprep.subr.mxu0 0.0
        %902 = vmatpush1.msra.mxu0 0.0
        %903 = vmatprep.subr.mxu0 0.0
        %904 = vmatpush1.msra.mxu0 0.0
        %905 = vmatprep.subr.mxu0 0.0
        %906 = vmatpush1.msra.mxu0 0.0
        %907 = vmatprep.subr.mxu0 0.0
        %908 = vmatpush1.msra.mxu0 0.0
        %909 = vmatprep.mubr.f32.mxu0 0.0
        %910 = vmatmul.mubr.f32.gmra.mrb[0].mxu0 %v843
        %v911 = vpop.f32.mrb[0].mxu0
        %v912 = vadd.f32 %v840, %v911
        %v913 = vpop.f32.mrb[0].mxu0
        %914 = vdwg.mxu0
        %v915 = vmax.f32 %v912, 0.0
        %v916 = vld [vmem:[#allocation7] sm:$0xff]
        %v917 = vld [vmem:[#allocation7 + $0x8] sm:$0xff]
        %v918 = vld [vmem:[#allocation7 + $0x10] sm:$0xff]
        %v919 = vld [vmem:[#allocation7 + $0x18] sm:$0xff]
        %v920 = vld [vmem:[#allocation7 + $0x20] sm:$0xff]
        %v921 = vld [vmem:[#allocation7 + $0x28] sm:$0xff]
        %v922 = vld [vmem:[#allocation7 + $0x30] sm:$0xff]
        %v923 = vld [vmem:[#allocation7 + $0x38] sm:$0xff]
        %v924 = vld [vmem:[%s11] sm:$0x1]
        %v926 = vlaneseq
        %v927 = vshrl.u32 %v926, 7
        %v928 = vsub.s32 0, %v927
        %v929 = vrot.slane %v924, %v928
        %v932 = vsel %vm662, %v915, 0
        %934 = vmatprep.subr.mxu0 0.0
        %935 = vmatpush1.msra.mxu0 %v916
        %936 = vmatprep.subr.mxu0 0.0
        %937 = vmatpush1.msra.mxu0 %v917
        %938 = vmatprep.subr.mxu0 0.0
        %939 = vmatpush1.msra.mxu0 %v918
        %940 = vmatprep.subr.mxu0 0.0
        %941 = vmatpush1.msra.mxu0 %v919
        %942 = vmatprep.subr.mxu0 0.0
        %943 = vmatpush1.msra.mxu0 %v920
        %944 = vmatprep.subr.mxu0 0.0
        %945 = vmatpush1.msra.mxu0 %v921
        %946 = vmatprep.subr.mxu0 0.0
        %947 = vmatpush1.msra.mxu0 %v922
        %948 = vmatprep.subr.mxu0 0.0
        %949 = vmatpush1.msra.mxu0 %v923
        %950 = vmatprep.subr.mxu0 0.0
        %951 = vmatpush1.msra.mxu0 0.0
        %952 = vmatprep.subr.mxu0 0.0
        %953 = vmatpush1.msra.mxu0 0.0
        %954 = vmatprep.subr.mxu0 0.0
        %955 = vmatpush1.msra.mxu0 0.0
        %956 = vmatprep.subr.mxu0 0.0
        %957 = vmatpush1.msra.mxu0 0.0
        %958 = vmatprep.subr.mxu0 0.0
        %959 = vmatpush1.msra.mxu0 0.0
        %960 = vmatprep.subr.mxu0 0.0
        %961 = vmatpush1.msra.mxu0 0.0
        %962 = vmatprep.subr.mxu0 0.0
        %963 = vmatpush1.msra.mxu0 0.0
        %964 = vmatprep.subr.mxu0 0.0
        %965 = vmatpush1.msra.mxu0 0.0
        %966 = vmatprep.subr.mxu0 0.0
        %967 = vmatpush1.msra.mxu0 0.0
        %968 = vmatprep.subr.mxu0 0.0
        %969 = vmatpush1.msra.mxu0 0.0
        %970 = vmatprep.subr.mxu0 0.0
        %971 = vmatpush1.msra.mxu0 0.0
        %972 = vmatprep.subr.mxu0 0.0
        %973 = vmatpush1.msra.mxu0 0.0
        %974 = vmatprep.subr.mxu0 0.0
        %975 = vmatpush1.msra.mxu0 0.0
        %976 = vmatprep.subr.mxu0 0.0
        %977 = vmatpush1.msra.mxu0 0.0
        %978 = vmatprep.subr.mxu0 0.0
        %979 = vmatpush1.msra.mxu0 0.0
        %980 = vmatprep.subr.mxu0 0.0
        %981 = vmatpush1.msra.mxu0 0.0
        %982 = vmatprep.subr.mxu0 0.0
        %983 = vmatpush1.msra.mxu0 0.0
        %984 = vmatprep.subr.mxu0 0.0
        %985 = vmatpush1.msra.mxu0 0.0
        %986 = vmatprep.subr.mxu0 0.0
        %987 = vmatpush1.msra.mxu0 0.0
        %988 = vmatprep.subr.mxu0 0.0
        %989 = vmatpush1.msra.mxu0 0.0
        %990 = vmatprep.subr.mxu0 0.0
        %991 = vmatpush1.msra.mxu0 0.0
        %992 = vmatprep.subr.mxu0 0.0
        %993 = vmatpush1.msra.mxu0 0.0
        %994 = vmatprep.subr.mxu0 0.0
        %995 = vmatpush1.msra.mxu0 0.0
        %996 = vmatprep.subr.mxu0 0.0
        %997 = vmatpush1.msra.mxu0 0.0
        %998 = vmatprep.mubr.f32.mxu0 0.0
        %999 = vmatmul.mubr.f32.gmra.mrb[0].mxu0 %v932
        %v1000 = vpop.f32.mrb[0].mxu0
        %v1001 = vadd.f32 %v929, %v1000
        %v1002 = vpop.f32.mrb[0].mxu0
        %1003 = vdwg.mxu0
        %v1004 = vsub.f32 0.0, %v1001
        %v1005 = vmul.f32 %v1004, 1.442695
        %v1006 = vpow.pop %v1005
        %v1007 = vadd.f32 %v1006, 1.0
        %v1008 = vrcp.pop %v1007
        %v1009 = vmul.f32 1.0, %v1008
        %1010 = vst [vmem:[%s537] sm:$0xff] %v1009
        %1011 = vst.msk [vmem:[%s544] sm:$0xff] %vm662, %v733
        %1012 = vst.msk [vmem:[%s551] sm:$0xff] %vm662, %v818
        %s1013 = sand.u32 %s308, 1
        %s1014 = scalar_lea.sflag [#allocation4], %s1013
        %s1015 = sand.u32 %s308, 1
        %s1016 = smul.addr %s1015, 8
        %s1017 = scalar_lea.vmem [#allocation8], %s1016
        %s1018 = sand.u32 %s38, 1
        %s1019 = scalar_lea.sflag [#allocation10], %s1018
        %s1020 = sand.u32 %s334, 1
        %s1021 = smul.addr %s1020, 8
        %s1022 = scalar_lea.vmem [#allocation9], %s1021
        %s1023 = sand.u32 %s38, 1
        %s1024 = scalar_lea.sflag [#allocation10], %s1023
        %s1025 = sand.u32 %s360, 1
        %s1026 = smul.addr %s1025, 8
        %s1027 = scalar_lea.vmem [#allocation11], %s1026
        // Predicated region
        $region81: #{tpu_custom_call.1} parent=67 // pred_check
          %p1028 = pneg %p318
        $region82: #{tpu_custom_call.1} parent=67 // pred_check_branch
          %1030 = sbr.rel (%p1028) target = $region84
        $region83: #{tpu_custom_call.1} parent=67 // pred_region
          %s1032 = ssub.s32 128, 128
          %1033 = vsyncadd %s1014, %s1032
          %s1034 = smul.addr %s38, 128
          %s1035 = scalar_lea.hbm %s12, %s1034
          %s1037 = sshll.u32 %s1017, 4
          %s1038 = int_to_ptr.vmem [resolvable:$true] %s1037
          %1040 = dma.vmem_to_hbm [thread:$0]  %s1038, 128, %s1035, %s1014
        $region84: #{tpu_custom_call.1} parent=67 // pred_fallthru
          _
        // Predicated region
        $region85: #{tpu_custom_call.1} parent=67 // pred_check
          %p1041 = pneg %p344
        $region86: #{tpu_custom_call.1} parent=67 // pred_check_branch
          %1043 = sbr.rel (%p1041) target = $region88
        $region87: #{tpu_custom_call.1} parent=67 // pred_region
          %s1045 = ssub.s32 128, 128
          %1046 = vsyncadd %s1019, %s1045
          %s1047 = smul.addr %s38, 128
          %s1048 = scalar_lea.hbm %s13, %s1047
          %s1050 = sshll.u32 %s1022, 4
          %s1051 = int_to_ptr.vmem [resolvable:$true] %s1050
          %1053 = dma.vmem_to_hbm [thread:$0]  %s1051, 128, %s1048, %s1019
        $region88: #{tpu_custom_call.1} parent=67 // pred_fallthru
          _
        // Predicated region
        $region89: #{tpu_custom_call.1} parent=67 // pred_check
          %p1054 = pneg %p370
        $region90: #{tpu_custom_call.1} parent=67 // pred_check_branch
          %1056 = sbr.rel (%p1054) target = $region92
        $region91: #{tpu_custom_call.1} parent=67 // pred_region
          %s1058 = ssub.s32 128, 128
          %1059 = vsyncadd %s1024, %s1058
          %s1060 = smul.addr %s38, 128
          %s1061 = scalar_lea.hbm %s14, %s1060
          %s1063 = sshll.u32 %s1027, 4
          %s1064 = int_to_ptr.vmem [resolvable:$true] %s1063
          %1066 = dma.vmem_to_hbm [thread:$0]  %s1064, 128, %s1061, %s1024
        $region92: #{tpu_custom_call.1} parent=67 // pred_fallthru
          _
      $region68: #{tpu_custom_call.1} parent=5 // pred_fallthru
        _
      %p1067 = scmp.le.s32.totalorder 2, %s33
      // Predicated region
      $region93: #{tpu_custom_call.1} parent=5 // pred_check
        %p1068 = pneg %p1067
      $region94: #{tpu_custom_call.1} parent=5 // pred_check_branch
        %1070 = sbr.rel (%p1068) target = $region96
      $region95: #{tpu_custom_call.1} parent=5 // pred_region
        %s1071 = ssub.s32 %s33, 2
        // Predicated region
        $region97: #{tpu_custom_call.1} parent=95 // pred_check
          %p1072 = pneg %p324
        $region98: #{tpu_custom_call.1} parent=95 // pred_check_branch
          %1074 = sbr.rel (%p1072) target = $region100
        $region99: #{tpu_custom_call.1} parent=95 // pred_region
          %s1075 = sand.u32 %s309, 1
          %s1076 = scalar_lea.sflag [#allocation4], %s1075
          %s1077 = sand.u32 %s309, 1
          %s1078 = smul.addr %s1077, 8
          %s1079 = scalar_lea.vmem [#allocation8], %s1078
          %1080 = dma.done %s1076, 128
        $region100: #{tpu_custom_call.1} parent=95 // pred_fallthru
          _
        // Predicated region
        $region101: #{tpu_custom_call.1} parent=95 // pred_check
          %p1081 = pneg %p350
        $region102: #{tpu_custom_call.1} parent=95 // pred_check_branch
          %1083 = sbr.rel (%p1081) target = $region104
        $region103: #{tpu_custom_call.1} parent=95 // pred_region
          %s1084 = sand.u32 %s39, 1
          %s1085 = scalar_lea.sflag [#allocation10], %s1084
          %s1086 = sand.u32 %s335, 1
          %s1087 = smul.addr %s1086, 8
          %s1088 = scalar_lea.vmem [#allocation9], %s1087
          %1089 = dma.done %s1085, 128
        $region104: #{tpu_custom_call.1} parent=95 // pred_fallthru
          _
        // Predicated region
        $region105: #{tpu_custom_call.1} parent=95 // pred_check
          %p1090 = pneg %p376
        $region106: #{tpu_custom_call.1} parent=95 // pred_check_branch
          %1092 = sbr.rel (%p1090) target = $region108
        $region107: #{tpu_custom_call.1} parent=95 // pred_region
          %s1093 = sand.u32 %s39, 1
          %s1094 = scalar_lea.sflag [#allocation10], %s1093
          %s1095 = sand.u32 %s361, 1
          %s1096 = smul.addr %s1095, 8
          %s1097 = scalar_lea.vmem [#allocation11], %s1096
          %1098 = dma.done %s1094, 128
        $region108: #{tpu_custom_call.1} parent=95 // pred_fallthru
          _
      $region96: #{tpu_custom_call.1} parent=5 // pred_fallthru
        _
    $region6: #{tpu_custom_call.1} parent=1 // loop_footer
      %s37 = sadd.s32 1, %s33
    $region7: #{tpu_custom_call.1} parent=1 // loop_footer_branch
      %32 = sbr.rel target = $region3
    $region8: #{tpu_custom_call.1} parent=1 // loop_exit
      _
    %1099 = vsyncpa [#allocation3], 1
    %s1100 = scalar_lea.sflag [#allocation3], 1
    %1101 = vsyncpa %s1100, 1
    %1102 = vsyncpa [#allocation6], 1
    %s1103 = scalar_lea.sflag [#allocation6], 1
    %1104 = vsyncpa %s1103, 1
    %1105 = vsyncpa [#allocation4], 1
    %s1106 = scalar_lea.sflag [#allocation4], 1
    %1107 = vsyncpa %s1106, 1
    %1108 = vsyncpa [#allocation10], 1
    %s1109 = scalar_lea.sflag [#allocation10], 1
    %1110 = vsyncpa %s1109, 1

</llo_original>
